<compile_context>
chip_gen: v6e
topology: v6e:2x2x1
jax: 0.10.0
libtpu: 0.0.40
codegen_flags: <defaults>
</compile_context>

<pallas_src>
import math
import functools

import jax
import jax.numpy as jnp
from jax.experimental import pallas as pl
from jax.experimental.pallas import tpu as pltpu


def _round_up(x, m):
    return ((x + m - 1) // m) * m


_VMEM_LIMIT = 32 * 1024 * 1024  # explicit scoped-VMEM budget (safe on v5e/v6e/v7x)


# ---------------------------------------------------------------------------
# Linear projection: y = x @ w + b   (w already transposed to (Din, Dout)).
# Single K pass: full Din/Dout per block, grid over M tiles only.
# ---------------------------------------------------------------------------
def _linear_kernel(x_ref, w_ref, b_ref, o_ref):
    o_ref[...] = (jnp.dot(x_ref[...], w_ref[...],
                          preferred_element_type=jnp.float32)
                  + b_ref[...])


def _linear(x, w_t, b):
    """x: (M, Din) f32, w_t: (Din, Dout) f32, b: (Dout,) f32 -> (M, Dout) f32."""
    M, Din = x.shape
    Dout = w_t.shape[1]

    din_p = _round_up(Din, 128)
    dout_p = _round_up(Dout, 128)
    # TODO(synk): for Din/Dout >~ 2048 a K/N-tiled reduction variant would be
    # needed; BERT QKV projections are D x D with D <= ~1024 so single pass is fine.
    if M <= 512:
        tm, m_p = _round_up(M, 8), _round_up(M, 8)
    else:
        tm, m_p = 256, _round_up(M, 256)

    x_p = jnp.pad(x, ((0, m_p - M), (0, din_p - Din)))
    w_p = jnp.pad(w_t, ((0, din_p - Din), (0, dout_p - Dout)))
    b_p = jnp.pad(b, (0, dout_p - Dout)).reshape(1, dout_p)

    out = pl.pallas_call(
        _linear_kernel,
        out_shape=jax.ShapeDtypeStruct((m_p, dout_p), jnp.float32),
        grid_spec=pltpu.PrefetchScalarGridSpec(
            num_scalar_prefetch=0,
            grid=(m_p // tm,),
            in_specs=[
                pl.BlockSpec((tm, din_p), lambda i: (i, 0)),
                # constant block index -> weight stays VMEM-resident across M tiles
                pl.BlockSpec((din_p, dout_p), lambda i: (0, 0)),
                pl.BlockSpec((1, dout_p), lambda i: (0, 0)),
            ],
            out_specs=pl.BlockSpec((tm, dout_p), lambda i: (i, 0)),
        ),
        compiler_params=pltpu.CompilerParams(
            dimension_semantics=("parallel",),
            vmem_limit_bytes=_VMEM_LIMIT),
    )(x_p, w_p, b_p)
    return out[:M, :Dout]


# ---------------------------------------------------------------------------
# Attention kernels. Blocks carry ALL heads: Q (H, tq, dh), K/V (H, tkv, dh),
# mask (tq, tkv) shared across heads.  Q is pre-scaled (scale folded into Wq).
# ---------------------------------------------------------------------------
def _finish_reciprocal(l):
    inv = pl.reciprocal(l, approx=True)      # EUP slot
    return inv * (2.0 - l * inv)             # one Newton step -> near-f32 accuracy


def _attn_single_kernel(q_ref, k_ref, v_ref, mask_ref, o_ref, *, kv_len, padded_len):
    """Fast path: whole KV sequence in one tile -> plain row softmax."""
    q = q_ref[...]                            # (H, tq, dh)
    k = k_ref[...]                            # (H, L_p, dh)
    v = v_ref[...]                            # (H, L_p, dh)

    s = jnp.einsum('hqd,hkd->hqk', q, k,
                   preferred_element_type=jnp.float32)        # (H, tq, L_p)
    add = (1.0 - mask_ref[...]) * (-10000.0)                   # (tq, L_p) once for all heads
    s = s + add[None, :, :]
    if kv_len < padded_len:                   # static: mask padded key columns in-kernel
        col = jax.lax.broadcasted_iota(jnp.int32, s.shape, 2)
        s = jnp.where(col < kv_len, s, -1e30)

    m = jnp.max(s, axis=-1, keepdims=True)
    p = jnp.exp(s - m)
    l = jnp.sum(p, axis=-1, keepdims=True)
    ctx = jnp.einsum('hqk,hkd->hqd', p, v,
                     preferred_element_type=jnp.float32)       # (H, tq, dh)
    o_ref[...] = (ctx * _finish_reciprocal(l)).astype(o_ref.dtype)


def _attn_flash_kernel(q_ref, k_ref, v_ref, mask_ref, o_ref,
                       m_sc, l_sc, acc_sc, *, kv_len, padded_len, tkv):
    """Flash path: online softmax over KV tiles (trailing 'arbitrary' grid axis)."""
    ki = pl.program_id(2)

    @pl.when(ki == 0)
    def _():
        m_sc[...] = jnp.full_like(m_sc, -jnp.inf)
        l_sc[...] = jnp.zeros_like(l_sc)
        acc_sc[...] = jnp.zeros_like(acc_sc)

    q = q_ref[...]                            # (H, tq, dh)
    k = k_ref[...]                            # (H, tkv, dh)
    v = v_ref[...]                            # (H, tkv, dh)

    s = jnp.einsum('hqd,hkd->hqk', q, k,
                   preferred_element_type=jnp.float32)        # (H, tq, tkv)
    add = (1.0 - mask_ref[...]) * (-10000.0)                   # (tq, tkv)
    s = s + add[None, :, :]
    if kv_len < padded_len:
        col = ki * tkv + jax.lax.broadcasted_iota(jnp.int32, s.shape, 2)
        s = jnp.where(col < kv_len, s, -1e30)

    m_prev = m_sc[...]
    m_new = jnp.maximum(m_prev, s.max(axis=-1, keepdims=True))
    alpha = jnp.exp(m_prev - m_new)
    p = jnp.exp(s - m_new)
    l_sc[...] = alpha * l_sc[...] + p.sum(axis=-1, keepdims=True)
    acc_sc[...] = alpha * acc_sc[...] + jnp.einsum(
        'hqk,hkd->hqd', p, v, preferred_element_type=jnp.float32)
    m_sc[...] = m_new

    @pl.when(ki == pl.num_programs(2) - 1)
    def _():
        l = l_sc[...]
        o_ref[...] = (acc_sc[...] * _finish_reciprocal(l)).astype(o_ref.dtype)


def _mha(qh, kh, vh, mask_p, kv_len, tq, tkv):
    """qh: (N, H, lq_p, dh), kh/vh: (N, H, l_p, dh), mask_p: (N, lq_p, l_p) raw 0/1."""
    N, H, lq_p, dh = qh.shape
    l_p = kh.shape[2]
    n_kv = l_p // tkv
    out_shape = jax.ShapeDtypeStruct((N, H, lq_p, dh), jnp.float32)

    if n_kv == 1:
        kernel = functools.partial(_attn_single_kernel, kv_len=kv_len, padded_len=l_p)
        return pl.pallas_call(
            kernel,
            out_shape=out_shape,
            grid_spec=pltpu.PrefetchScalarGridSpec(
                num_scalar_prefetch=0,
                grid=(N, lq_p // tq),
                in_specs=[
                    pl.BlockSpec((None, H, tq, dh), lambda b, qi: (b, 0, qi, 0)),
                    pl.BlockSpec((None, H, l_p, dh), lambda b, qi: (b, 0, 0, 0)),
                    pl.BlockSpec((None, H, l_p, dh), lambda b, qi: (b, 0, 0, 0)),
                    pl.BlockSpec((None, tq, l_p), lambda b, qi: (b, qi, 0)),
                ],
                out_specs=pl.BlockSpec((None, H, tq, dh), lambda b, qi: (b, 0, qi, 0)),
            ),
            compiler_params=pltpu.CompilerParams(
                dimension_semantics=("parallel", "parallel"),
                vmem_limit_bytes=_VMEM_LIMIT),
        )(qh, kh, vh, mask_p)

    kernel = functools.partial(_attn_flash_kernel,
                               kv_len=kv_len, padded_len=l_p, tkv=tkv)
    return pl.pallas_call(
        kernel,
        out_shape=out_shape,
        grid_spec=pltpu.PrefetchScalarGridSpec(
            num_scalar_prefetch=0,
            grid=(N, lq_p // tq, n_kv),
            in_specs=[
                pl.BlockSpec((None, H, tq, dh), lambda b, qi, ki: (b, 0, qi, 0)),
                pl.BlockSpec((None, H, tkv, dh), lambda b, qi, ki: (b, 0, ki, 0)),
                pl.BlockSpec((None, H, tkv, dh), lambda b, qi, ki: (b, 0, ki, 0)),
                # mask shared across all heads: loaded once per (b, q-tile, kv-tile)
                pl.BlockSpec((None, tq, tkv), lambda b, qi, ki: (b, qi, ki)),
            ],
            out_specs=pl.BlockSpec((None, H, tq, dh), lambda b, qi, ki: (b, 0, qi, 0)),
            scratch_shapes=[
                pltpu.VMEM((H, tq, 1), jnp.float32),   # running max
                pltpu.VMEM((H, tq, 1), jnp.float32),   # running sum
                pltpu.VMEM((H, tq, dh), jnp.float32),  # running weighted sum
            ],
        ),
        compiler_params=pltpu.CompilerParams(
            dimension_semantics=("parallel", "parallel", "arbitrary"),
            vmem_limit_bytes=_VMEM_LIMIT),
    )(qh, kh, vh, mask_p)


# ---------------------------------------------------------------------------
# Full forward, matching BertSelfAttention.forward semantics (inference).
# ---------------------------------------------------------------------------
def bert_self_attention_forward(query_states, key_states, value_states,
                                attention_mask, wq, bq, wk, bk, wv, bv,
                                num_heads):
    N, Lq, D = query_states.shape
    L = key_states.shape[1]
    H = num_heads
    dh = D // H
    scale = 1.0 / math.sqrt(dh)

    # --- Q/K/V projections (PyTorch Linear: y = x @ W.T + b).
    # The 1/sqrt(dh) score scale is folded into the Q projection (free).
    q_proj = _linear(query_states.reshape(N * Lq, D), wq.T * scale, bq * scale)
    k_proj = _linear(key_states.reshape(N * L, D), wk.T, bk)
    v_proj = _linear(value_states.reshape(N * L, D), wv.T, bv)

    # --- sequence-dim tiling / padding ---------------------------------------
    if Lq <= 512:
        tq, lq_p = _round_up(Lq, 8), _round_up(Lq, 8)
    else:
        tq, lq_p = 256, _round_up(Lq, 256)
    l_128 = _round_up(L, 128)           # lane-dense score matrices
    if l_128 <= 1024:
        tkv, l_p = l_128, l_128         # single KV tile -> non-flash fast path
    else:
        tkv, l_p = 512, _round_up(L, 512)

    # --- split heads: (N*L, D) -> (N, H, L_pad, dh) ---------------------------
    def to_heads(x, length, lpad):
        x = x.reshape(N, length, H, dh).transpose(0, 2, 1, 3)
        return jnp.pad(x, ((0, 0), (0, 0), (0, lpad - length), (0, 0)))

    qh = to_heads(q_proj, Lq, lq_p)
    kh = to_heads(k_proj, L, l_p)
    vh = to_heads(v_proj, L, l_p)

    # Raw binary mask, zero-padded; additive form + padded-column masking done in-kernel.
    mask_p = jnp.pad(attention_mask.astype(jnp.float32),
                     ((0, 0), (0, lq_p - Lq), (0, l_p - L)))

    ctx = _mha(qh, kh, vh, mask_p, L, tq, tkv)          # (N, H, lq_p, dh)

    # merge heads back: (N, H, Lq, dh) -> (N, Lq, D)
    ctx = (ctx[:, :, :Lq, :]
           .transpose(0, 2, 1, 3)
           .reshape(N, Lq, D))
    return ctx


# ---------------------------------------------------------------------------
# Plain-JAX reference (mirrors the PyTorch module, dropout = identity).
# ---------------------------------------------------------------------------
def _reference_forward(query_states, key_states, value_states, attention_mask,
                       wq, bq, wk, bk, wv, bv, num_heads):
    N, Lq, D = query_states.shape
    L = key_states.shape[1]
    H = num_heads
    dh = D // H
    add_mask = (1.0 - attention_mask)[:, None, :, :] * -10000.0
    q = (query_states @ wq.T + bq).reshape(N, Lq, H, dh).transpose(0, 2, 1, 3)
    k = (key_states @ wk.T + bk).reshape(N, L, H, dh).transpose(0, 2, 1, 3)
    v = (value_states @ wv.T + bv).reshape(N, L, H, dh).transpose(0, 2, 1, 3)
    s = jnp.einsum('nhqd,nhkd->nhqk', q, k) / math.sqrt(dh) + add_mask
    p = jax.nn.softmax(s, axis=-1)
    ctx = jnp.einsum('nhqk,nhkd->nhqd', p, v)
    return ctx.transpose(0, 2, 1, 3).reshape(N, Lq, D)


def _run_case(key, N, Lq, L, D, H):
    ks = jax.random.split(key, 10)
    query_states = jax.random.normal(ks[0], (N, Lq, D), jnp.float32)
    key_states = jax.random.normal(ks[1], (N, L, D), jnp.float32)
    value_states = jax.random.normal(ks[2], (N, L, D), jnp.float32)
    attention_mask = (jax.random.uniform(ks[3], (N, Lq, L)) > 0.2).astype(jnp.float32)
    wq = 0.1 * jax.random.normal(ks[4], (D, D), jnp.float32)
    wk = 0.1 * jax.random.normal(ks[5], (D, D), jnp.float32)
    wv = 0.1 * jax.random.normal(ks[6], (D, D), jnp.float32)
    bq = 0.1 * jax.random.normal(ks[7], (D,), jnp.float32)
    bk = 0.1 * jax.random.normal(ks[8], (D,), jnp.float32)
    bv = 0.1 * jax.random.normal(ks[9], (D,), jnp.float32)

    out = bert_self_attention_forward(query_states, key_states, value_states,
                                      attention_mask, wq, bq, wk, bk, wv, bv,
                                      num_heads=H)
    out = jax.block_until_ready(out)
    ref = _reference_forward(query_states, key_states, value_states,
                             attention_mask, wq, bq, wk, bk, wv, bv, H)
    assert out.shape == (N, Lq, D)
    err = float(jnp.max(jnp.abs(out - ref)))
    assert jnp.allclose(out, ref, atol=2e-3, rtol=2e-3), (
        "mismatch vs reference, max abs err = %g" % err)


if __name__ == "__main__":
    key = jax.random.PRNGKey(0)
    k1, k2 = jax.random.split(key)

    # Primary small config (single-KV-tile fast path):
    # hidden=32, heads=4 (head_dim=8), batch=2, Lq=8, L=16.
    _run_case(k1, N=2, Lq=8, L=16, D=32, H=4)

    # Secondary check exercising the flash (multi-KV-tile) path and ragged padding.
    _run_case(k2, N=1, Lq=10, L=1200, D=32, H=4)

    print("KERNEL_OK")
</pallas_src>

<mosaic_0001>
module attributes {stable_mosaic.version = 11 : i64} {
  func.func @_linear_kernel(%arg0: i32, %arg1: memref<16x128xf32, #tpu.memory_space<vmem>>, %arg2: memref<128x128xf32, #tpu.memory_space<vmem>>, %arg3: memref<1x128xf32, #tpu.memory_space<vmem>>, %arg4: memref<16x128xf32, #tpu.memory_space<vmem>>) attributes {dimension_semantics = [#tpu.dimension_semantics<parallel>], iteration_bounds = array<i64: 1>, scalar_prefetch = 0 : i64, scratch_operands = 0 : i64, tpu.core_type = #tpu.core_type<tc>, window_params = [{transform_indices = @transform_0, window_bounds = array<i64: 16, 128>}, {pipeline_mode = #tpu.pipeline_mode<synchronous>, transform_indices = @transform_1, window_bounds = array<i64: 128, 128>}, {pipeline_mode = #tpu.pipeline_mode<synchronous>, transform_indices = @transform_2, window_bounds = array<i64: 1, 128>}, {transform_indices = @transform_3, window_bounds = array<i64: 16, 128>}]} {
    %c0 = arith.constant 0 : index
    %c0_0 = arith.constant 0 : index
    %0 = vector.load %arg1[%c0, %c0_0] : memref<16x128xf32, #tpu.memory_space<vmem>>, vector<16x128xf32>
    %c0_1 = arith.constant 0 : index
    %c0_2 = arith.constant 0 : index
    %1 = vector.load %arg2[%c0_1, %c0_2] : memref<128x128xf32, #tpu.memory_space<vmem>>, vector<128x128xf32>
    %cst = arith.constant dense<0.000000e+00> : vector<16x128xf32>
    %2 = tpu.matmul %0, %1, %cst {dimension_numbers = #tpu.dot_dimension_numbers<[1], [0], [0], [1], [0, 0, 1, 1], [], []>} : vector<16x128xf32>, vector<128x128xf32>, vector<16x128xf32> -> vector<16x128xf32>
    %c0_3 = arith.constant 0 : index
    %c0_4 = arith.constant 0 : index
    %3 = vector.load %arg3[%c0_3, %c0_4] : memref<1x128xf32, #tpu.memory_space<vmem>>, vector<1x128xf32>
    %4 = vector.broadcast %3 : vector<1x128xf32> to vector<16x128xf32>
    %5 = arith.addf %2, %4 : vector<16x128xf32>
    %c0_5 = arith.constant 0 : index
    %c0_6 = arith.constant 0 : index
    %6 = vector.load %arg4[%c0_5, %c0_6] : memref<16x128xf32, #tpu.memory_space<vmem>>, vector<16x128xf32>
    tpu.vector_store %arg4[%c0_5, %c0_6], %5 {strides = array<i32>} : memref<16x128xf32, #tpu.memory_space<vmem>>, vector<16x128xf32>,
    return
  }
  func.func @transform_0(%arg0: i32) -> (i32, i32) {
    %c0_i32 = arith.constant 0 : i32
    %c0_i32_0 = arith.constant 0 : i32
    return %arg0, %c0_i32 : i32, i32
  }
  func.func @transform_1(%arg0: i32) -> (i32, i32) {
    %c0_i32 = arith.constant 0 : i32
    %c0_i32_0 = arith.constant 0 : i32
    %c0_i32_1 = arith.constant 0 : i32
    return %c0_i32, %c0_i32_0 : i32, i32
  }
  func.func @transform_2(%arg0: i32) -> (i32, i32) {
    %c0_i32 = arith.constant 0 : i32
    %c0_i32_0 = arith.constant 0 : i32
    %c0_i32_1 = arith.constant 0 : i32
    return %c0_i32, %c0_i32_0 : i32, i32
  }
  func.func @transform_3(%arg0: i32) -> (i32, i32) {
    %c0_i32 = arith.constant 0 : i32
    %c0_i32_0 = arith.constant 0 : i32
    return %arg0, %c0_i32 : i32, i32
  }
}

</mosaic_0001>

<llo_original>
// kernel: tpu_custom_call.1
$region0: #{tpu_custom_call.1}
  #allocation0 [shape = 'u32[]', space=smem, size = 0x4, offset = 0x4, fixed_abs, tag = 'smem constant byte address 0x4 - core index']
  #allocation1 [shape = 'u32[144,128]{1,0:T(1,128)}', space=vmem, size = 0x12000, scoped, tag = 'internal scratch']
  %s0 = inlined_call_operand.hbm [shape: f32[16,128], index: 0, kind: input, shape index: {}]
  %s1 = inlined_call_operand.hbm [shape: f32[128,128], index: 1, kind: input, shape index: {}]
  %s2 = inlined_call_operand.vmem [shape: f32[1,128], index: 2, kind: input, shape index: {}]
  %s3 = inlined_call_operand.hbm [shape: f32[16,128], index: 3, kind: output, shape index: {}]
  %s4 = sld [smem:[#allocation0]]
  $region30: #{tpu_custom_call.1} parent=0
    _
  %s6 = ssub.s32 1, %s4
  %s7 = scalar_select 0, %s6, %s4
  $region1: #{tpu_custom_call.1} parent=0
    #allocation2 [shape = 'u8[8192]{0}', space=vmem, size = 0x2000, scoped, tag = 'input window, operand 0, single buffered']
    #allocation3 [shape = 's32[1]{0}', space=sflag, size = 0x4, scoped, tag = 'scoped memory for tpu_custom_call.1']
    #allocation4 [shape = 's32[1]{0}', space=sflag, size = 0x4, scoped, tag = 'scoped memory for tpu_custom_call.1']
    #allocation5 [shape = 'u8[65536]{0}', space=vmem, size = 0x10000, scoped, tag = 'input window, operand 1, single buffered']
    #allocation6 [shape = 's32[1]{0}', space=sflag, size = 0x4, scoped, tag = 'scoped memory for tpu_custom_call.1']
    #allocation7 [shape = 'u8[8192]{0}', space=vmem, size = 0x2000, scoped, tag = 'output window, operand 0, single buffered']
    %8 = vsyncpa [#allocation3], 0
    %9 = vsyncpa [#allocation6], 0
    %10 = vsyncpa [#allocation4], 0
    // Predicated region
    $region2: #{tpu_custom_call.1} parent=1 // pred_check
      _
    $region3: #{tpu_custom_call.1} parent=1 // pred_check_branch
      %12 = sbr.rel (0) target = $region5
    $region4: #{tpu_custom_call.1} parent=1 // pred_region
      %s14 = ssub.s32 256, 256
      %15 = vsyncadd [#allocation3], %s14
      %s16 = sshll.u32 [#allocation2], 4
      %s17 = int_to_ptr.vmem [resolvable:$true] %s16
      %22 = dma.hbm_to_vmem [thread:$0]  %s0, 256, %s17, [#allocation3], 128, 128, 8
    $region5: #{tpu_custom_call.1} parent=1 // pred_fallthru
      _
    // Predicated region
    $region6: #{tpu_custom_call.1} parent=1 // pred_check
      _
    $region7: #{tpu_custom_call.1} parent=1 // pred_check_branch
      %24 = sbr.rel (0) target = $region9
    $region8: #{tpu_custom_call.1} parent=1 // pred_region
      %s26 = ssub.s32 2048, 2048
      %27 = vsyncadd [#allocation6], %s26
      %s28 = sshll.u32 [#allocation5], 4
      %s29 = int_to_ptr.vmem [resolvable:$true] %s28
      %34 = dma.hbm_to_vmem [thread:$0]  %s1, 2048, %s29, [#allocation6], 128, 128, 8
    $region9: #{tpu_custom_call.1} parent=1 // pred_fallthru
      _
    // Predicated region
    $region10: #{tpu_custom_call.1} parent=1 // pred_check
      _
    $region11: #{tpu_custom_call.1} parent=1 // pred_check_branch
      %36 = sbr.rel (0) target = $region13
    $region12: #{tpu_custom_call.1} parent=1 // pred_region
      _
    $region13: #{tpu_custom_call.1} parent=1 // pred_fallthru
      _
    // Predicated region
    $region14: #{tpu_custom_call.1} parent=1 // pred_check
      _
    $region15: #{tpu_custom_call.1} parent=1 // pred_check_branch
      %38 = sbr.rel (0) target = $region17
    $region16: #{tpu_custom_call.1} parent=1 // pred_region
      %39 = dma.done [#allocation3], 256
    $region17: #{tpu_custom_call.1} parent=1 // pred_fallthru
      _
    // Predicated region
    $region18: #{tpu_custom_call.1} parent=1 // pred_check
      _
    $region19: #{tpu_custom_call.1} parent=1 // pred_check_branch
      %41 = sbr.rel (0) target = $region21
    $region20: #{tpu_custom_call.1} parent=1 // pred_region
      %42 = dma.done [#allocation6], 2048
    $region21: #{tpu_custom_call.1} parent=1 // pred_fallthru
      _
    %v43 = vld [vmem:[#allocation2] sm:$0xff]
    %v44 = vld [vmem:[#allocation2 + $0x8] sm:$0xff]
    %v45 = vld [vmem:[#allocation5] sm:$0xff]
    %v46 = vld [vmem:[#allocation5 + $0x8] sm:$0xff]
    %v47 = vld [vmem:[#allocation5 + $0x10] sm:$0xff]
    %v48 = vld [vmem:[#allocation5 + $0x18] sm:$0xff]
    %v49 = vld [vmem:[#allocation5 + $0x20] sm:$0xff]
    %v50 = vld [vmem:[#allocation5 + $0x28] sm:$0xff]
    %v51 = vld [vmem:[#allocation5 + $0x30] sm:$0xff]
    %v52 = vld [vmem:[#allocation5 + $0x38] sm:$0xff]
    %v53 = vld [vmem:[#allocation5 + $0x40] sm:$0xff]
    %v54 = vld [vmem:[#allocation5 + $0x48] sm:$0xff]
    %v55 = vld [vmem:[#allocation5 + $0x50] sm:$0xff]
    %v56 = vld [vmem:[#allocation5 + $0x58] sm:$0xff]
    %v57 = vld [vmem:[#allocation5 + $0x60] sm:$0xff]
    %v58 = vld [vmem:[#allocation5 + $0x68] sm:$0xff]
    %v59 = vld [vmem:[#allocation5 + $0x70] sm:$0xff]
    %v60 = vld [vmem:[#allocation5 + $0x78] sm:$0xff]
    %v61 = vld [vmem:[%s2] sm:$0x1]
    %v63 = vlaneseq
    %v64 = vshrl.u32 %v63, 7
    %v65 = vsub.s32 0, %v64
    %v66 = vrot.slane %v61, %v65
    %68 = vmatprep.subr.mxu0 0.0
    %69 = vmatpush1.msra.mxu0 %v60
    %70 = vmatprep.subr.mxu0 0.0
    %71 = vmatpush1.msra.mxu0 %v59
    %72 = vmatprep.subr.mxu0 0.0
    %73 = vmatpush1.msra.mxu0 %v58
    %74 = vmatprep.subr.mxu0 0.0
    %75 = vmatpush1.msra.mxu0 %v57
    %76 = vmatprep.subr.mxu0 0.0
    %77 = vmatpush1.msra.mxu0 %v56
    %78 = vmatprep.subr.mxu0 0.0
    %79 = vmatpush1.msra.mxu0 %v55
    %80 = vmatprep.subr.mxu0 0.0
    %81 = vmatpush1.msra.mxu0 %v54
    %82 = vmatprep.subr.mxu0 0.0
    %83 = vmatpush1.msra.mxu0 %v53
    %84 = vmatprep.subr.mxu0 0.0
    %85 = vmatpush1.msra.mxu0 %v52
    %86 = vmatprep.subr.mxu0 0.0
    %87 = vmatpush1.msra.mxu0 %v51
    %88 = vmatprep.subr.mxu0 0.0
    %89 = vmatpush1.msra.mxu0 %v50
    %90 = vmatprep.subr.mxu0 0.0
    %91 = vmatpush1.msra.mxu0 %v49
    %92 = vmatprep.subr.mxu0 0.0
    %93 = vmatpush1.msra.mxu0 %v48
    %94 = vmatprep.subr.mxu0 0.0
    %95 = vmatpush1.msra.mxu0 %v47
    %96 = vmatprep.subr.mxu0 0.0
    %97 = vmatpush1.msra.mxu0 %v46
    %98 = vmatprep.subr.mxu0 0.0
    %99 = vmatpush1.msra.mxu0 %v45
    %100 = vmatprep.subr.mxu0 0.0
    %101 = vmatpush2.msra.mxu0 0.0
    %102 = vmatprep.subr.mxu0 0.0
    %103 = vmatpush2.msra.mxu0 0.0
    %104 = vmatprep.subr.mxu0 0.0
    %105 = vmatpush2.msra.mxu0 0.0
    %106 = vmatprep.subr.mxu0 0.0
    %107 = vmatpush2.msra.mxu0 0.0
    %108 = vmatprep.subr.mxu0 0.0
    %109 = vmatpush2.msra.mxu0 0.0
    %110 = vmatprep.subr.mxu0 0.0
    %111 = vmatpush2.msra.mxu0 0.0
    %112 = vmatprep.subr.mxu0 0.0
    %113 = vmatpush2.msra.mxu0 0.0
    %114 = vmatprep.subr.mxu0 0.0
    %115 = vmatpush2.msra.mxu0 0.0
    %116 = vmatprep.subr.mxu0 0.0
    %117 = vmatpush2.msra.mxu0 0.0
    %118 = vmatprep.subr.mxu0 0.0
    %119 = vmatpush2.msra.mxu0 0.0
    %120 = vmatprep.subr.mxu0 0.0
    %121 = vmatpush2.msra.mxu0 0.0
    %122 = vmatprep.subr.mxu0 0.0
    %123 = vmatpush2.msra.mxu0 0.0
    %124 = vmatprep.subr.mxu0 0.0
    %125 = vmatpush2.msra.mxu0 0.0
    %126 = vmatprep.subr.mxu0 0.0
    %127 = vmatpush2.msra.mxu0 0.0
    %128 = vmatprep.subr.mxu0 0.0
    %129 = vmatpush2.msra.mxu0 0.0
    %130 = vmatprep.subr.mxu0 0.0
    %131 = vmatpush2.msra.mxu0 0.0
    %132 = vmatprep.mubr.f32.mxu0 0.0
    %133 = vmatmul.mubr.f32.gmra.mxu0 %v43
    %v134 = vpop.f32.mrf.mxu0
    %v135 = vadd.f32 %v66, %v134
    %v136 = vpop.f32.mrf.mxu0
    %137 = vmatprep.mubr.f32.mxu0 0.0
    %138 = vmatmul.mubr.f32.gmra.mxu0 %v44
    %v139 = vpop.f32.mrf.mxu0
    %v140 = vadd.f32 %v66, %v139
    %v141 = vpop.f32.mrf.mxu0
    %142 = vdwg.mxu0
    %143 = vst [vmem:[#allocation7] sm:$0xff] %v135
    %144 = vst [vmem:[#allocation7 + $0x8] sm:$0xff] %v140
    // Predicated region
    $region22: #{tpu_custom_call.1} parent=1 // pred_check
      _
    $region23: #{tpu_custom_call.1} parent=1 // pred_check_branch
      %146 = sbr.rel (0) target = $region25
    $region24: #{tpu_custom_call.1} parent=1 // pred_region
      %s148 = ssub.s32 256, 256
      %149 = vsyncadd [#allocation4], %s148
      %s150 = sshll.u32 [#allocation7], 4
      %s151 = int_to_ptr.vmem [resolvable:$true] %s150
      %156 = dma.vmem_to_hbm [thread:$0]  %s151, 256, %s3, [#allocation4], 128, 128, 8
    $region25: #{tpu_custom_call.1} parent=1 // pred_fallthru
      _
    // Predicated region
    $region26: #{tpu_custom_call.1} parent=1 // pred_check
      _
    $region27: #{tpu_custom_call.1} parent=1 // pred_check_branch
      %158 = sbr.rel (0) target = $region29
    $region28: #{tpu_custom_call.1} parent=1 // pred_region
      %159 = dma.done [#allocation4], 256
    $region29: #{tpu_custom_call.1} parent=1 // pred_fallthru
      _
    %160 = vsyncpa [#allocation3], 1
    %161 = vsyncpa [#allocation6], 1
    %162 = vsyncpa [#allocation4], 1

</llo_original>
